<compile_context>
chip_gen: v6e
topology: v6e:2x2x1
jax: 0.10.0
libtpu: 0.0.40
codegen_flags: <defaults>
</compile_context>

<pallas_src>
import functools

import jax
import jax.numpy as jnp
from jax.experimental import pallas as pl
from jax.experimental.pallas import tpu as pltpu


def _kernel(x_ref, w_ref, b_ref, o_ref):
    # x_ref: (TB, F)   w_ref: (F, C)   b_ref: (1, C)   o_ref: (TB, C)
    x = x_ref[...]

    # Linear layer on the MXU, accumulate in f32.
    logits = jnp.dot(x, w_ref[...], preferred_element_type=jnp.float32) + b_ref[...]

    # ReLU.
    act = jnp.maximum(logits, 0.0)

    # Numerically stable softmax over the (unpadded) class dimension.
    m = jnp.max(act, axis=-1, keepdims=True)
    e = jnp.exp(act - m)
    denom = jnp.sum(e, axis=-1, keepdims=True)
    # Exact divide (not an approx reciprocal) so rows sum to 1 to f32 rounding;
    # its cost is invisible next to the HBM traffic of this kernel.
    o_ref[...] = (e / denom).astype(o_ref.dtype)


def _choose_batch_tile(B, block_b):
    """Pick the batch tile: as large as possible (amortizes ~0.35us/grid-step),
    a multiple of 8 (or the whole batch, which is always a legal block), and
    keep >= 2 grid steps on big batches so dimension_semantics=('parallel',)
    can shard the batch axis across the two TensorCores on v7x."""
    if B <= block_b:
        if B >= 2048 and B % 16 == 0:
            return B // 2          # 2 grid steps -> v7x megacore split
        return B                   # single block == full dim (always legal)
    return max((block_b // 8) * 8, 8)


@functools.partial(jax.jit, static_argnames=("block_b",))
def classifier_forward(x, w, b, *, block_b=4096):
    """x: [B, F] f32, w: [F, C] f32, b: [1, C] f32 -> [B, C] f32 probabilities."""
    B, F = x.shape
    Fw, C = w.shape
    assert F == Fw and b.shape == (1, C)

    TB = _choose_batch_tile(B, block_b)
    grid = (pl.cdiv(B, TB),)

    return pl.pallas_call(
        _kernel,
        out_shape=jax.ShapeDtypeStruct((B, C), jnp.float32),
        grid_spec=pltpu.PrefetchScalarGridSpec(
            num_scalar_prefetch=0,
            grid=grid,
            in_specs=[
                pl.BlockSpec((TB, F), lambda i: (i, 0)),   # x: tiled over batch
                pl.BlockSpec((F, C), lambda i: (0, 0)),    # W: resident across steps
                pl.BlockSpec((1, C), lambda i: (0, 0)),    # b: resident across steps
            ],
            out_specs=pl.BlockSpec((TB, C), lambda i: (i, 0)),
        ),
        compiler_params=pltpu.CompilerParams(
            dimension_semantics=("parallel",),
        ),
    )(x, w, b)


def reference_forward(x, w, b):
    logits = x @ w + b
    act = jnp.maximum(logits, 0.0)
    return jax.nn.softmax(act, axis=1)


if __name__ == "__main__":
    # Shapes implied by the module: input [batch, features_length], 7 classes.
    B = 8      # batch
    F = 32     # features_length
    C = 7      # nn.Linear(features_length, 7)

    key = jax.random.PRNGKey(0)
    kx, kw, kb = jax.random.split(key, 3)

    x = jax.random.normal(kx, (B, F), dtype=jnp.float32)

    # Deterministic parameter init mimicking nn.Linear: U(-1/sqrt(F), 1/sqrt(F)).
    bound = 1.0 / (F ** 0.5)
    w = jax.random.uniform(kw, (F, C), dtype=jnp.float32, minval=-bound, maxval=bound)
    b = jax.random.uniform(kb, (1, C), dtype=jnp.float32, minval=-bound, maxval=bound)

    out = jax.block_until_ready(classifier_forward(x, w, b))
    ref = reference_forward(x, w, b)

    assert out.shape == (B, C)
    assert jnp.allclose(jnp.sum(out, axis=1), 1.0, atol=1e-5)
    assert jnp.allclose(out, ref, atol=1e-4, rtol=1e-4)

    # Exercise the multi-block tiled path (grid = 3 batch tiles of 64 rows).
    B2 = 192
    x2 = jax.random.normal(jax.random.PRNGKey(1), (B2, F), dtype=jnp.float32)
    out2 = jax.block_until_ready(classifier_forward(x2, w, b, block_b=64))
    ref2 = reference_forward(x2, w, b)
    assert out2.shape == (B2, C)
    assert jnp.allclose(jnp.sum(out2, axis=1), 1.0, atol=1e-5)
    assert jnp.allclose(out2, ref2, atol=1e-4, rtol=1e-4)

    print("KERNEL_OK")
</pallas_src>

<mosaic_0001>
module attributes {stable_mosaic.version = 11 : i64} {
  func.func @_kernel(%arg0: i32, %arg1: memref<8x32xf32, #tpu.memory_space<vmem>>, %arg2: memref<32x7xf32, #tpu.memory_space<vmem>>, %arg3: memref<1x7xf32, #tpu.memory_space<vmem>>, %arg4: memref<8x7xf32, #tpu.memory_space<vmem>>) attributes {dimension_semantics = [#tpu.dimension_semantics<parallel>], iteration_bounds = array<i64: 1>, scalar_prefetch = 0 : i64, scratch_operands = 0 : i64, tpu.core_type = #tpu.core_type<tc>, window_params = [{transform_indices = @transform_0, window_bounds = array<i64: 8, 32>}, {pipeline_mode = #tpu.pipeline_mode<synchronous>, transform_indices = @transform_1, window_bounds = array<i64: 32, 7>}, {pipeline_mode = #tpu.pipeline_mode<synchronous>, transform_indices = @transform_2, window_bounds = array<i64: 1, 7>}, {transform_indices = @transform_3, window_bounds = array<i64: 8, 7>}]} {
    %c0 = arith.constant 0 : index
    %c0_0 = arith.constant 0 : index
    %0 = vector.load %arg1[%c0, %c0_0] : memref<8x32xf32, #tpu.memory_space<vmem>>, vector<8x32xf32>
    %c0_1 = arith.constant 0 : index
    %c0_2 = arith.constant 0 : index
    %1 = vector.load %arg2[%c0_1, %c0_2] : memref<32x7xf32, #tpu.memory_space<vmem>>, vector<32x7xf32>
    %cst = arith.constant dense<0.000000e+00> : vector<8x7xf32>
    %2 = tpu.matmul %0, %1, %cst {dimension_numbers = #tpu.dot_dimension_numbers<[1], [0], [0], [1], [0, 0, 1, 1], [], []>} : vector<8x32xf32>, vector<32x7xf32>, vector<8x7xf32> -> vector<8x7xf32>
    %c0_3 = arith.constant 0 : index
    %c0_4 = arith.constant 0 : index
    %3 = vector.load %arg3[%c0_3, %c0_4] : memref<1x7xf32, #tpu.memory_space<vmem>>, vector<1x7xf32>
    %4 = vector.broadcast %3 : vector<1x7xf32> to vector<8x7xf32>
    %5 = arith.addf %2, %4 : vector<8x7xf32>
    %cst_5 = arith.constant 0.000000e+00 : f32
    %6 = vector.broadcast %cst_5 : f32 to vector<8x7xf32>
    %7 = arith.maximumf %5, %6 : vector<8x7xf32>
    %cst_6 = arith.constant dense<0xFF800000> : vector<8xf32>
    %8 = vector.multi_reduction <maximumf>, %7, %cst_6 [1] : vector<8x7xf32> to vector<8xf32>
    %9 = vector.shape_cast %8 : vector<8xf32> to vector<8x1xf32>
    %10 = vector.broadcast %9 : vector<8x1xf32> to vector<8x7xf32>
    %11 = arith.subf %7, %10 : vector<8x7xf32>
    %12 = math.exp %11 : vector<8x7xf32>
    %cst_7 = arith.constant dense<0.000000e+00> : vector<8xf32>
    %13 = vector.multi_reduction <add>, %12, %cst_7 [1] : vector<8x7xf32> to vector<8xf32>
    %14 = vector.shape_cast %13 : vector<8xf32> to vector<8x1xf32>
    %15 = vector.broadcast %14 : vector<8x1xf32> to vector<8x7xf32>
    %16 = arith.divf %12, %15 : vector<8x7xf32>
    %c0_8 = arith.constant 0 : index
    %c0_9 = arith.constant 0 : index
    %17 = vector.load %arg4[%c0_8, %c0_9] : memref<8x7xf32, #tpu.memory_space<vmem>>, vector<8x7xf32>
    tpu.vector_store %arg4[%c0_8, %c0_9], %16 {strides = array<i32>} : memref<8x7xf32, #tpu.memory_space<vmem>>, vector<8x7xf32>,
    return
  }
  func.func @transform_0(%arg0: i32) -> (i32, i32) {
    %c0_i32 = arith.constant 0 : i32
    %c0_i32_0 = arith.constant 0 : i32
    return %arg0, %c0_i32 : i32, i32
  }
  func.func @transform_1(%arg0: i32) -> (i32, i32) {
    %c0_i32 = arith.constant 0 : i32
    %c0_i32_0 = arith.constant 0 : i32
    %c0_i32_1 = arith.constant 0 : i32
    return %c0_i32, %c0_i32_0 : i32, i32
  }
  func.func @transform_2(%arg0: i32) -> (i32, i32) {
    %c0_i32 = arith.constant 0 : i32
    %c0_i32_0 = arith.constant 0 : i32
    %c0_i32_1 = arith.constant 0 : i32
    return %c0_i32, %c0_i32_0 : i32, i32
  }
  func.func @transform_3(%arg0: i32) -> (i32, i32) {
    %c0_i32 = arith.constant 0 : i32
    %c0_i32_0 = arith.constant 0 : i32
    return %arg0, %c0_i32 : i32, i32
  }
}

</mosaic_0001>

<llo_original>
// kernel: classifier_forward.1
$region0: #{classifier_forward.1}
  #allocation0 [shape = 'u32[]', space=smem, size = 0x4, offset = 0x4, fixed_abs, tag = 'smem constant byte address 0x4 - core index']
  #allocation1 [shape = 'u32[144,128]{1,0:T(1,128)}', space=vmem, size = 0x12000, scoped, tag = 'internal scratch']
  %s0 = inlined_call_operand.vmem [shape: f32[8,32], index: 0, kind: input, shape index: {}]
  %s1 = inlined_call_operand.vmem [shape: f32[32,7], index: 1, kind: input, shape index: {}]
  %s2 = inlined_call_operand.vmem [shape: f32[1,7], index: 2, kind: input, shape index: {}]
  %s3 = inlined_call_operand.hbm [shape: f32[8,7], index: 3, kind: output, shape index: {}]
  %s4 = sld [smem:[#allocation0]]
  $region22: #{classifier_forward.1} parent=0
    _
  %s6 = ssub.s32 1, %s4
  %s7 = scalar_select 0, %s6, %s4
  $region1: #{classifier_forward.1} parent=0
    #allocation2 [shape = 'u8[4096]{0}', space=vmem, size = 0x1000, scoped, tag = 'output window, operand 0, single buffered']
    #allocation3 [shape = 's32[1]{0}', space=sflag, size = 0x4, scoped, tag = 'scoped memory for classifier_forward.1']
    %8 = vsyncpa [#allocation3], 0
    // Predicated region
    $region2: #{classifier_forward.1} parent=1 // pred_check
      _
    $region3: #{classifier_forward.1} parent=1 // pred_check_branch
      %10 = sbr.rel (0) target = $region5
    $region4: #{classifier_forward.1} parent=1 // pred_region
      _
    $region5: #{classifier_forward.1} parent=1 // pred_fallthru
      _
    // Predicated region
    $region6: #{classifier_forward.1} parent=1 // pred_check
      _
    $region7: #{classifier_forward.1} parent=1 // pred_check_branch
      %12 = sbr.rel (0) target = $region9
    $region8: #{classifier_forward.1} parent=1 // pred_region
      _
    $region9: #{classifier_forward.1} parent=1 // pred_fallthru
      _
    // Predicated region
    $region10: #{classifier_forward.1} parent=1 // pred_check
      _
    $region11: #{classifier_forward.1} parent=1 // pred_check_branch
      %14 = sbr.rel (0) target = $region13
    $region12: #{classifier_forward.1} parent=1 // pred_region
      _
    $region13: #{classifier_forward.1} parent=1 // pred_fallthru
      _
    %v15 = vld [vmem:[%s0] sm:$0xff]
    %v16 = vld [vmem:[%s1] sm:$0xff]
    %v17 = vld [vmem:[%s1 + $0x8] sm:$0xff]
    %v18 = vld [vmem:[%s1 + $0x10] sm:$0xff]
    %v19 = vld [vmem:[%s1 + $0x18] sm:$0xff]
    %v20 = vld [vmem:[%s2] sm:$0x1]
    %v22 = vlaneseq
    %v23 = vshrl.u32 %v22, 7
    %v24 = vsub.s32 0, %v23
    %v25 = vrot.slane %v20, %v24
    %vm27 = vcmask 261120
    %v29 = vsel %vm27, %v15, 0
    %31 = vmatprep.subr.mxu0 0.0
    %32 = vmatpush1.msra.mxu0 0.0
    %33 = vmatprep.subr.mxu0 0.0
    %34 = vmatpush1.msra.mxu0 0.0
    %35 = vmatprep.subr.mxu0 0.0
    %36 = vmatpush1.msra.mxu0 0.0
    %37 = vmatprep.subr.mxu0 0.0
    %38 = vmatpush1.msra.mxu0 0.0
    %39 = vmatprep.subr.mxu0 0.0
    %40 = vmatpush1.msra.mxu0 0.0
    %41 = vmatprep.subr.mxu0 0.0
    %42 = vmatpush1.msra.mxu0 0.0
    %43 = vmatprep.subr.mxu0 0.0
    %44 = vmatpush1.msra.mxu0 0.0
    %45 = vmatprep.subr.mxu0 0.0
    %46 = vmatpush1.msra.mxu0 0.0
    %47 = vmatprep.subr.mxu0 0.0
    %48 = vmatpush1.msra.mxu0 0.0
    %49 = vmatprep.subr.mxu0 0.0
    %50 = vmatpush1.msra.mxu0 0.0
    %51 = vmatprep.subr.mxu0 0.0
    %52 = vmatpush1.msra.mxu0 0.0
    %53 = vmatprep.subr.mxu0 0.0
    %54 = vmatpush1.msra.mxu0 0.0
    %55 = vmatprep.subr.mxu0 0.0
    %56 = vmatpush1.msra.mxu0 %v19
    %57 = vmatprep.subr.mxu0 0.0
    %58 = vmatpush1.msra.mxu0 %v18
    %59 = vmatprep.subr.mxu0 0.0
    %60 = vmatpush1.msra.mxu0 %v17
    %61 = vmatprep.subr.mxu0 0.0
    %62 = vmatpush1.msra.mxu0 %v16
    %63 = vmatprep.subr.mxu0 0.0
    %64 = vmatpush2.msra.mxu0 0.0
    %65 = vmatprep.subr.mxu0 0.0
    %66 = vmatpush2.msra.mxu0 0.0
    %67 = vmatprep.subr.mxu0 0.0
    %68 = vmatpush2.msra.mxu0 0.0
    %69 = vmatprep.subr.mxu0 0.0
    %70 = vmatpush2.msra.mxu0 0.0
    %71 = vmatprep.subr.mxu0 0.0
    %72 = vmatpush2.msra.mxu0 0.0
    %73 = vmatprep.subr.mxu0 0.0
    %74 = vmatpush2.msra.mxu0 0.0
    %75 = vmatprep.subr.mxu0 0.0
    %76 = vmatpush2.msra.mxu0 0.0
    %77 = vmatprep.subr.mxu0 0.0
    %78 = vmatpush2.msra.mxu0 0.0
    %79 = vmatprep.subr.mxu0 0.0
    %80 = vmatpush2.msra.mxu0 0.0
    %81 = vmatprep.subr.mxu0 0.0
    %82 = vmatpush2.msra.mxu0 0.0
    %83 = vmatprep.subr.mxu0 0.0
    %84 = vmatpush2.msra.mxu0 0.0
    %85 = vmatprep.subr.mxu0 0.0
    %86 = vmatpush2.msra.mxu0 0.0
    %87 = vmatprep.subr.mxu0 0.0
    %88 = vmatpush2.msra.mxu0 0.0
    %89 = vmatprep.subr.mxu0 0.0
    %90 = vmatpush2.msra.mxu0 0.0
    %91 = vmatprep.subr.mxu0 0.0
    %92 = vmatpush2.msra.mxu0 0.0
    %93 = vmatprep.subr.mxu0 0.0
    %94 = vmatpush2.msra.mxu0 0.0
    %95 = vmatprep.mubr.f32.mxu0 0.0
    %96 = vmatmul.mubr.f32.gmra.mxu0 %v29
    %v97 = vpop.f32.mrf.mxu0
    %v98 = vadd.f32 %v25, %v97
    %v99 = vpop.f32.mrf.mxu0
    %100 = vdwg.mxu0
    %v101 = vmax.f32 %v98, 0.0
    %vm102 = vcmask 56320
    %v103 = vsel %vm102, %v101, -inf
    %104 = vmax.xlane.f32.xlu0 %v103
    %v105 = vpop.xlane.xlu0 %104
    %v106 = vsub.f32 %v101, %v105
    %v107 = vmul.f32 %v106, 1.442695
    %v108 = vpow.pop %v107
    %v109 = vsel %vm102, %v108, 0.0
    %110 = vadd.xlane.f32.xlu0 %v109
    %v111 = vpop.xlane.xlu0 %110
    %v112 = vrcp.pop %v111
    %v113 = vmul.f32 %v108, %v112
    %114 = vst.msk [vmem:[#allocation2] sm:$0xff] %vm102, %v113
    // Predicated region
    $region14: #{classifier_forward.1} parent=1 // pred_check
      _
    $region15: #{classifier_forward.1} parent=1 // pred_check_branch
      %116 = sbr.rel (0) target = $region17
    $region16: #{classifier_forward.1} parent=1 // pred_region
      %s118 = ssub.s32 128, 128
      %119 = vsyncadd [#allocation3], %s118
      %s121 = sshll.u32 [#allocation2], 4
      %s122 = int_to_ptr.vmem [resolvable:$true] %s121
      %124 = dma.vmem_to_hbm [thread:$0]  %s122, 128, %s3, [#allocation3]
    $region17: #{classifier_forward.1} parent=1 // pred_fallthru
      _
    // Predicated region
    $region18: #{classifier_forward.1} parent=1 // pred_check
      _
    $region19: #{classifier_forward.1} parent=1 // pred_check_branch
      %126 = sbr.rel (0) target = $region21
    $region20: #{classifier_forward.1} parent=1 // pred_region
      %127 = dma.done [#allocation3], 128
    $region21: #{classifier_forward.1} parent=1 // pred_fallthru
      _
    %128 = vsyncpa [#allocation3], 1

</llo_original>
